<compile_context>
chip_gen: v6e
topology: v6e:2x2x1
jax: 0.10.0
libtpu: 0.0.40
codegen_flags: <defaults>
</compile_context>

<pallas_src>
import functools

import jax
import jax.numpy as jnp
from jax import lax
from jax.experimental import pallas as pl
from jax.experimental.pallas import tpu as pltpu


def _spatial_att_kernel(
    xgf_ref,   # (1, 2*d_in, N)   [x | g] full spatial extent (K/V path)
    xgt_ref,   # (1, 2*d_in, Tq)  [x | g] query tile           (Q path)
    xres_ref,  # (1, d_in,  Tq)   x query tile                 (residual)
    w12_ref,   # (d_int, 2*d_in)  fused conv_1 | conv_2 weight
    b12_ref,   # (d_int, 1)       b1 + b2
    wq_ref,    # (d8, d_int)      query projection
    bq_ref,    # (d8, 1)
    wkv_ref,   # (d8 + d_in, d_int)  fused [key ; gamma*value] projection
    bkv_ref,   # (d8 + d_in, 1)
    out_ref,   # (1, d_in, Tq)
):
    d8 = wq_ref.shape[0]

    # ---- K / V over the full spatial extent (channels on sublanes, N on lanes) ----
    data_kv = jnp.maximum(
        jnp.dot(w12_ref[...], xgf_ref[0], preferred_element_type=jnp.float32)
        + b12_ref[...],
        0.0,
    )                                                                 # (d_int, N)
    kv = (
        jnp.dot(wkv_ref[...], data_kv, preferred_element_type=jnp.float32)
        + bkv_ref[...]
    )                                                                 # (d8 + d_in, N)
    k = kv[:d8]                                                       # (d8, N)
    v = kv[d8:]                                                       # (d_in, N), gamma pre-folded

    # ---- Q over just this query tile ----
    data_q = jnp.maximum(
        jnp.dot(w12_ref[...], xgt_ref[0], preferred_element_type=jnp.float32)
        + b12_ref[...],
        0.0,
    )                                                                 # (d_int, Tq)
    q = (
        jnp.dot(wq_ref[...], data_q, preferred_element_type=jnp.float32)
        + bq_ref[...]
    )                                                                 # (d8, Tq)

    # energy[i, j] = <Q_i, K_j>  -> (Tq, N); bf16 MXU inputs, f32 accumulation.
    energy = lax.dot_general(
        q.astype(jnp.bfloat16),
        k.astype(jnp.bfloat16),
        (((0,), (0,)), ((), ())),
        preferred_element_type=jnp.float32,
    )                                                                 # (Tq, N)

    # Numerically-stable row softmax; approximate reciprocal goes to the EUP slot.
    m = jnp.max(energy, axis=-1, keepdims=True)
    p = jnp.exp(energy - m)
    att = p * pl.reciprocal(jnp.sum(p, axis=-1, keepdims=True), approx=True)

    # pam[c, i] = sum_j V[c, j] * att[i, j]  ==  bmm(V, att^T)  -> (d_in, Tq)
    pam = lax.dot_general(
        v.astype(jnp.bfloat16),
        att.astype(jnp.bfloat16),
        (((1,), (1,)), ((), ())),
        preferred_element_type=jnp.float32,
    )                                                                 # (d_in, Tq)

    # gamma already folded into v; residual add and lane-dense store.
    out_ref[0] = pam + xres_ref[0]


def spatial_att_pallas(x_nchw, g_nchw, params):
    """x_nchw, g_nchw: (B, d_in, H, W) float32.  Returns (B, d_in, H, W)."""
    B, d_in, H, W = x_nchw.shape
    N = H * W

    w1, w2 = params["w1"], params["w2"]            # (d_int, d_in)
    wq, wk, wv = params["wq"], params["wk"], params["wv"]
    d_int = w1.shape[0]
    d8 = wq.shape[0]
    gamma = params["gamma"][0]

    # ---- parameter folding (tiny, done once per call, fused by XLA) ----
    w12 = jnp.concatenate([w1, w2], axis=1)                            # (d_int, 2*d_in)
    b12 = (params["b1"] + params["b2"]).reshape(d_int, 1)
    wkv = jnp.concatenate([wk, gamma * wv], axis=0)                    # (d8+d_in, d_int)
    bkv = jnp.concatenate([params["bk"], gamma * params["bv"]]).reshape(d8 + d_in, 1)
    bq = params["bq"].reshape(d8, 1)

    # ---- native (B, C, N) layout: pure reshapes, no transposes ----
    x = x_nchw.reshape(B, d_in, N)
    g = g_nchw.reshape(B, d_in, N)
    xg = jnp.concatenate([x, g], axis=1)                               # (B, 2*d_in, N)

    tq = 128 if N % 128 == 0 else N                                    # query tile (lane-aligned)
    nq = N // tq

    out = pl.pallas_call(
        _spatial_att_kernel,
        out_shape=jax.ShapeDtypeStruct((B, d_in, N), jnp.float32),
        grid_spec=pltpu.PrefetchScalarGridSpec(
            num_scalar_prefetch=0,
            grid=(B, nq),
            in_specs=[
                pl.BlockSpec((1, 2 * d_in, N), lambda b, t: (b, 0, 0)),   # [x|g] full
                pl.BlockSpec((1, 2 * d_in, tq), lambda b, t: (b, 0, t)),  # [x|g] q-tile
                pl.BlockSpec((1, d_in, tq), lambda b, t: (b, 0, t)),      # x q-tile (residual)
                pl.BlockSpec((d_int, 2 * d_in), lambda b, t: (0, 0)),     # fused conv_1|conv_2 W
                pl.BlockSpec((d_int, 1), lambda b, t: (0, 0)),            # b1 + b2
                pl.BlockSpec((d8, d_int), lambda b, t: (0, 0)),           # query proj W
                pl.BlockSpec((d8, 1), lambda b, t: (0, 0)),               # query proj b
                pl.BlockSpec((d8 + d_in, d_int), lambda b, t: (0, 0)),    # fused key|gamma*value W
                pl.BlockSpec((d8 + d_in, 1), lambda b, t: (0, 0)),        # fused key|gamma*value b
            ],
            out_specs=pl.BlockSpec((1, d_in, tq), lambda b, t: (b, 0, t)),
        ),
        compiler_params=pltpu.CompilerParams(
            dimension_semantics=("parallel", "parallel"),
        ),
    )(xg, xg, x, w12, b12, wq, bq, wkv, bkv)

    return out.reshape(B, d_in, H, W)


def spatial_att_reference(x_nchw, g_nchw, params):
    """Pure-JAX reference mirroring the PyTorch forward (for verification)."""
    B, d_in, H, W = x_nchw.shape
    N = H * W
    x = x_nchw.reshape(B, d_in, N)
    g = g_nchw.reshape(B, d_in, N)

    proj = lambda w, b, t: jnp.einsum("oc,bcn->bon", w, t) + b[None, :, None]
    data = jnp.maximum(
        proj(params["w1"], params["b1"], x) + proj(params["w2"], params["b2"], g), 0.0
    )                                                                  # (B, d_int, N)
    q = proj(params["wq"], params["bq"], data)                         # (B, d8, N)
    k = proj(params["wk"], params["bk"], data)                         # (B, d8, N)
    v = proj(params["wv"], params["bv"], data)                         # (B, d_in, N)
    energy = jnp.einsum("bci,bcj->bij", q, k)                          # (B, N, N)
    att = jax.nn.softmax(energy, axis=-1)
    pam = jnp.einsum("bcj,bij->bci", v, att)                           # (B, d_in, N)
    out = params["gamma"][0] * pam + x
    return out.reshape(B, d_in, H, W)


def init_params(key, d_int, d_in):
    """Deterministic synthetic parameters (shapes from the PyTorch __init__)."""
    d8 = d_int // 8
    ks = jax.random.split(key, 10)
    mk = lambda k, shape, s: (s * jax.random.normal(k, shape)).astype(jnp.float32)
    return {
        # 1x1 convs stored as (Cout, Cin) weights + (Cout,) biases (torch conv layout, squeezed)
        "w1": mk(ks[0], (d_int, d_in), 0.3), "b1": mk(ks[1], (d_int,), 0.1),
        "w2": mk(ks[2], (d_int, d_in), 0.3), "b2": mk(ks[3], (d_int,), 0.1),
        "wq": mk(ks[4], (d8, d_int), 0.3),   "bq": mk(ks[5], (d8,), 0.1),
        "wk": mk(ks[6], (d8, d_int), 0.3),   "bk": mk(ks[7], (d8,), 0.1),
        "wv": mk(ks[8], (d_in, d_int), 0.3), "bv": mk(ks[9], (d_in,), 0.1),
        # gamma is torch.zeros(1) at init; use a nonzero value so the attention path
        # actually contributes to the output in this synthetic test.
        "gamma": jnp.full((1,), 0.5, dtype=jnp.float32),
    }


if __name__ == "__main__":
    B, d_in, H, W = 2, 4, 16, 16   # x, g : (B, d_in, H, W); N = 256
    d_int = 16                     # internal channels (d_int // 8 = 2 for Q/K)

    key = jax.random.PRNGKey(0)
    kx, kg, kp = jax.random.split(key, 3)
    x = jax.random.normal(kx, (B, d_in, H, W), dtype=jnp.float32)
    g = jax.random.normal(kg, (B, d_in, H, W), dtype=jnp.float32)
    params = init_params(kp, d_int, d_in)

    out = jax.jit(functools.partial(spatial_att_pallas, params=params))(x, g)
    out = jax.block_until_ready(out)

    ref = spatial_att_reference(x, g, params)
    assert out.shape == (B, d_in, H, W)
    # Tolerance loosened (bf16 attention matmuls + approx reciprocal; f32 accumulation).
    max_err = float(jnp.max(jnp.abs(out - ref)))
    assert jnp.allclose(out, ref, atol=2e-2, rtol=2e-2), f"mismatch vs reference (max abs err {max_err})"

    print("KERNEL_OK")
</pallas_src>

<mosaic_0001>
module attributes {stable_mosaic.version = 11 : i64} {
  func.func @_spatial_att_kernel(%arg0: i32, %arg1: i32, %arg2: memref<1x8x256xf32, #tpu.memory_space<vmem>>, %arg3: memref<1x8x128xf32, #tpu.memory_space<vmem>>, %arg4: memref<1x4x128xf32, #tpu.memory_space<vmem>>, %arg5: memref<16x8xf32, #tpu.memory_space<vmem>>, %arg6: memref<16x1xf32, #tpu.memory_space<vmem>>, %arg7: memref<2x16xf32, #tpu.memory_space<vmem>>, %arg8: memref<2x1xf32, #tpu.memory_space<vmem>>, %arg9: memref<6x16xf32, #tpu.memory_space<vmem>>, %arg10: memref<6x1xf32, #tpu.memory_space<vmem>>, %arg11: memref<1x4x128xf32, #tpu.memory_space<vmem>>) attributes {dimension_semantics = [#tpu.dimension_semantics<parallel>, #tpu.dimension_semantics<parallel>], iteration_bounds = array<i64: 2, 2>, scalar_prefetch = 0 : i64, scratch_operands = 0 : i64, tpu.core_type = #tpu.core_type<tc>, window_params = [{transform_indices = @transform_0, window_bounds = array<i64: 1, 8, 256>}, {transform_indices = @transform_1, window_bounds = array<i64: 1, 8, 128>}, {transform_indices = @transform_2, window_bounds = array<i64: 1, 4, 128>}, {pipeline_mode = #tpu.pipeline_mode<synchronous>, transform_indices = @transform_3, window_bounds = array<i64: 16, 8>}, {pipeline_mode = #tpu.pipeline_mode<synchronous>, transform_indices = @transform_4, window_bounds = array<i64: 16, 1>}, {pipeline_mode = #tpu.pipeline_mode<synchronous>, transform_indices = @transform_5, window_bounds = array<i64: 2, 16>}, {pipeline_mode = #tpu.pipeline_mode<synchronous>, transform_indices = @transform_6, window_bounds = array<i64: 2, 1>}, {pipeline_mode = #tpu.pipeline_mode<synchronous>, transform_indices = @transform_7, window_bounds = array<i64: 6, 16>}, {pipeline_mode = #tpu.pipeline_mode<synchronous>, transform_indices = @transform_8, window_bounds = array<i64: 6, 1>}, {transform_indices = @transform_9, window_bounds = array<i64: 1, 4, 128>}]} {
    %c0 = arith.constant 0 : index
    %c0_0 = arith.constant 0 : index
    %0 = vector.load %arg5[%c0, %c0_0] : memref<16x8xf32, #tpu.memory_space<vmem>>, vector<16x8xf32>
    %c0_1 = arith.constant 0 : index
    %c0_2 = arith.constant 0 : index
    %c0_3 = arith.constant 0 : index
    %1 = vector.load %arg2[%c0_1, %c0_2, %c0_3] : memref<1x8x256xf32, #tpu.memory_space<vmem>>, vector<1x8x256xf32>
    %2 = vector.shape_cast %1 : vector<1x8x256xf32> to vector<8x256xf32>
    %cst = arith.constant dense<0.000000e+00> : vector<16x256xf32>
    %3 = tpu.matmul %0, %2, %cst {dimension_numbers = #tpu.dot_dimension_numbers<[1], [0], [0], [1], [0, 0, 1, 1], [], []>} : vector<16x8xf32>, vector<8x256xf32>, vector<16x256xf32> -> vector<16x256xf32>
    %c0_4 = arith.constant 0 : index
    %c0_5 = arith.constant 0 : index
    %4 = vector.load %arg6[%c0_4, %c0_5] : memref<16x1xf32, #tpu.memory_space<vmem>>, vector<16x1xf32>
    %5 = vector.broadcast %4 : vector<16x1xf32> to vector<16x256xf32>
    %6 = arith.addf %3, %5 : vector<16x256xf32>
    %cst_6 = arith.constant 0.000000e+00 : f32
    %7 = vector.broadcast %cst_6 : f32 to vector<16x256xf32>
    %8 = arith.maximumf %6, %7 : vector<16x256xf32>
    %c0_7 = arith.constant 0 : index
    %c0_8 = arith.constant 0 : index
    %9 = vector.load %arg9[%c0_7, %c0_8] : memref<6x16xf32, #tpu.memory_space<vmem>>, vector<6x16xf32>
    %cst_9 = arith.constant dense<0.000000e+00> : vector<6x256xf32>
    %10 = tpu.matmul %9, %8, %cst_9 {dimension_numbers = #tpu.dot_dimension_numbers<[1], [0], [0], [1], [0, 0, 1, 1], [], []>} : vector<6x16xf32>, vector<16x256xf32>, vector<6x256xf32> -> vector<6x256xf32>
    %c0_10 = arith.constant 0 : index
    %c0_11 = arith.constant 0 : index
    %11 = vector.load %arg10[%c0_10, %c0_11] : memref<6x1xf32, #tpu.memory_space<vmem>>, vector<6x1xf32>
    %12 = vector.broadcast %11 : vector<6x1xf32> to vector<6x256xf32>
    %13 = arith.addf %10, %12 : vector<6x256xf32>
    %14 = vector.extract_strided_slice %13 {offsets = [0, 0], sizes = [2, 256], strides = [1, 1]} : vector<6x256xf32> to vector<2x256xf32>
    %15 = vector.extract_strided_slice %13 {offsets = [2, 0], sizes = [4, 256], strides = [1, 1]} : vector<6x256xf32> to vector<4x256xf32>
    %c0_12 = arith.constant 0 : index
    %c0_13 = arith.constant 0 : index
    %16 = vector.load %arg5[%c0_12, %c0_13] : memref<16x8xf32, #tpu.memory_space<vmem>>, vector<16x8xf32>
    %c0_14 = arith.constant 0 : index
    %c0_15 = arith.constant 0 : index
    %c0_16 = arith.constant 0 : index
    %17 = vector.load %arg3[%c0_14, %c0_15, %c0_16] : memref<1x8x128xf32, #tpu.memory_space<vmem>>, vector<1x8x128xf32>
    %18 = vector.shape_cast %17 : vector<1x8x128xf32> to vector<8x128xf32>
    %cst_17 = arith.constant dense<0.000000e+00> : vector<16x128xf32>
    %19 = tpu.matmul %16, %18, %cst_17 {dimension_numbers = #tpu.dot_dimension_numbers<[1], [0], [0], [1], [0, 0, 1, 1], [], []>} : vector<16x8xf32>, vector<8x128xf32>, vector<16x128xf32> -> vector<16x128xf32>
    %c0_18 = arith.constant 0 : index
    %c0_19 = arith.constant 0 : index
    %20 = vector.load %arg6[%c0_18, %c0_19] : memref<16x1xf32, #tpu.memory_space<vmem>>, vector<16x1xf32>
    %21 = vector.broadcast %20 : vector<16x1xf32> to vector<16x128xf32>
    %22 = arith.addf %19, %21 : vector<16x128xf32>
    %cst_20 = arith.constant 0.000000e+00 : f32
    %23 = vector.broadcast %cst_20 : f32 to vector<16x128xf32>
    %24 = arith.maximumf %22, %23 : vector<16x128xf32>
    %c0_21 = arith.constant 0 : index
    %c0_22 = arith.constant 0 : index
    %25 = vector.load %arg7[%c0_21, %c0_22] : memref<2x16xf32, #tpu.memory_space<vmem>>, vector<2x16xf32>
    %cst_23 = arith.constant dense<0.000000e+00> : vector<2x128xf32>
    %26 = tpu.matmul %25, %24, %cst_23 {dimension_numbers = #tpu.dot_dimension_numbers<[1], [0], [0], [1], [0, 0, 1, 1], [], []>} : vector<2x16xf32>, vector<16x128xf32>, vector<2x128xf32> -> vector<2x128xf32>
    %c0_24 = arith.constant 0 : index
    %c0_25 = arith.constant 0 : index
    %27 = vector.load %arg8[%c0_24, %c0_25] : memref<2x1xf32, #tpu.memory_space<vmem>>, vector<2x1xf32>
    %28 = vector.broadcast %27 : vector<2x1xf32> to vector<2x128xf32>
    %29 = arith.addf %26, %28 : vector<2x128xf32>
    %30 = arith.truncf %29 : vector<2x128xf32> to vector<2x128xbf16>
    %31 = arith.truncf %14 : vector<2x256xf32> to vector<2x256xbf16>
    %cst_26 = arith.constant dense<0.000000e+00> : vector<128x256xf32>
    %32 = tpu.matmul %30, %31, %cst_26 {dimension_numbers = #tpu.dot_dimension_numbers<[0], [0], [1], [1], [0, 1, 1, 1], [], []>} : vector<2x128xbf16>, vector<2x256xbf16>, vector<128x256xf32> -> vector<128x256xf32>
    %cst_27 = arith.constant dense<0xFF800000> : vector<128xf32>
    %33 = vector.multi_reduction <maximumf>, %32, %cst_27 [1] : vector<128x256xf32> to vector<128xf32>
    %34 = vector.shape_cast %33 : vector<128xf32> to vector<128x1xf32>
    %35 = vector.broadcast %34 : vector<128x1xf32> to vector<128x256xf32>
    %36 = arith.subf %32, %35 : vector<128x256xf32>
    %37 = math.exp %36 : vector<128x256xf32>
    %cst_28 = arith.constant dense<0.000000e+00> : vector<128xf32>
    %38 = vector.multi_reduction <add>, %37, %cst_28 [1] : vector<128x256xf32> to vector<128xf32>
    %39 = vector.shape_cast %38 : vector<128xf32> to vector<128x1xf32>
    %40 = tpu.reciprocal %39 {approx = true} : vector<128x1xf32> -> vector<128x1xf32>
    %41 = vector.broadcast %40 : vector<128x1xf32> to vector<128x256xf32>
    %42 = arith.mulf %37, %41 : vector<128x256xf32>
    %43 = arith.truncf %15 : vector<4x256xf32> to vector<4x256xbf16>
    %44 = arith.truncf %42 : vector<128x256xf32> to vector<128x256xbf16>
    %cst_29 = arith.constant dense<0.000000e+00> : vector<4x128xf32>
    %45 = tpu.matmul %43, %44, %cst_29 {dimension_numbers = #tpu.dot_dimension_numbers<[1], [1], [0], [0], [0, 0, 1, 0], [], []>} : vector<4x256xbf16>, vector<128x256xbf16>, vector<4x128xf32> -> vector<4x128xf32>
    %c0_30 = arith.constant 0 : index
    %c0_31 = arith.constant 0 : index
    %c0_32 = arith.constant 0 : index
    %46 = vector.load %arg4[%c0_30, %c0_31, %c0_32] : memref<1x4x128xf32, #tpu.memory_space<vmem>>, vector<1x4x128xf32>
    %47 = vector.shape_cast %46 : vector<1x4x128xf32> to vector<4x128xf32>
    %48 = arith.addf %45, %47 : vector<4x128xf32>
    %c0_33 = arith.constant 0 : index
    %c0_34 = arith.constant 0 : index
    %c0_35 = arith.constant 0 : index
    %49 = vector.load %arg11[%c0_33, %c0_34, %c0_35] : memref<1x4x128xf32, #tpu.memory_space<vmem>>, vector<1x4x128xf32>
    %50 = vector.shape_cast %49 : vector<1x4x128xf32> to vector<4x128xf32>
    %51 = vector.shape_cast %48 : vector<4x128xf32> to vector<1x4x128xf32>
    tpu.vector_store %arg11[%c0_33, %c0_34, %c0_35], %51 {strides = array<i32>} : memref<1x4x128xf32, #tpu.memory_space<vmem>>, vector<1x4x128xf32>,
    return
  }
  func.func @transform_0(%arg0: i32, %arg1: i32) -> (i32, i32, i32) {
    %c0_i32 = arith.constant 0 : i32
    %c0_i32_0 = arith.constant 0 : i32
    %c0_i32_1 = arith.constant 0 : i32
    return %arg0, %c0_i32, %c0_i32_0 : i32, i32, i32
  }
  func.func @transform_1(%arg0: i32, %arg1: i32) -> (i32, i32, i32) {
    %c0_i32 = arith.constant 0 : i32
    %c0_i32_0 = arith.constant 0 : i32
    return %arg0, %c0_i32, %arg1 : i32, i32, i32
  }
  func.func @transform_2(%arg0: i32, %arg1: i32) -> (i32, i32, i32) {
    %c0_i32 = arith.constant 0 : i32
    %c0_i32_0 = arith.constant 0 : i32
    return %arg0, %c0_i32, %arg1 : i32, i32, i32
  }
  func.func @transform_3(%arg0: i32, %arg1: i32) -> (i32, i32) {
    %c0_i32 = arith.constant 0 : i32
    %c0_i32_0 = arith.constant 0 : i32
    %c0_i32_1 = arith.constant 0 : i32
    return %c0_i32, %c0_i32_0 : i32, i32
  }
  func.func @transform_4(%arg0: i32, %arg1: i32) -> (i32, i32) {
    %c0_i32 = arith.constant 0 : i32
    %c0_i32_0 = arith.constant 0 : i32
    %c0_i32_1 = arith.constant 0 : i32
    return %c0_i32, %c0_i32_0 : i32, i32
  }
  func.func @transform_5(%arg0: i32, %arg1: i32) -> (i32, i32) {
    %c0_i32 = arith.constant 0 : i32
    %c0_i32_0 = arith.constant 0 : i32
    %c0_i32_1 = arith.constant 0 : i32
    return %c0_i32, %c0_i32_0 : i32, i32
  }
  func.func @transform_6(%arg0: i32, %arg1: i32) -> (i32, i32) {
    %c0_i32 = arith.constant 0 : i32
    %c0_i32_0 = arith.constant 0 : i32
    %c0_i32_1 = arith.constant 0 : i32
    return %c0_i32, %c0_i32_0 : i32, i32
  }
  func.func @transform_7(%arg0: i32, %arg1: i32) -> (i32, i32) {
    %c0_i32 = arith.constant 0 : i32
    %c0_i32_0 = arith.constant 0 : i32
    %c0_i32_1 = arith.constant 0 : i32
    return %c0_i32, %c0_i32_0 : i32, i32
  }
  func.func @transform_8(%arg0: i32, %arg1: i32) -> (i32, i32) {
    %c0_i32 = arith.constant 0 : i32
    %c0_i32_0 = arith.constant 0 : i32
    %c0_i32_1 = arith.constant 0 : i32
    return %c0_i32, %c0_i32_0 : i32, i32
  }
  func.func @transform_9(%arg0: i32, %arg1: i32) -> (i32, i32, i32) {
    %c0_i32 = arith.constant 0 : i32
    %c0_i32_0 = arith.constant 0 : i32
    return %arg0, %c0_i32, %arg1 : i32, i32, i32
  }
}

</mosaic_0001>

<llo_original>
// kernel: spatial_att_pallas.1
$region0: #{spatial_att_pallas.1}
  #allocation0 [shape = 'u32[]', space=smem, size = 0x4, offset = 0x4, fixed_abs, tag = 'smem constant byte address 0x4 - core index']
  #allocation1 [shape = 'u32[144,128]{1,0:T(1,128)}', space=vmem, size = 0x12000, scoped, tag = 'internal scratch']
  %s0 = inlined_call_operand.vmem [shape: f32[2,8,256], index: 0, kind: input, shape index: {}, may-alias: {0,1}]
  %s1 = inlined_call_operand.vmem [shape: f32[2,8,256], index: 1, kind: input, shape index: {}, may-alias: {0,1}]
  %s2 = inlined_call_operand.vmem [shape: f32[2,4,256], index: 2, kind: input, shape index: {}]
  %s3 = inlined_call_operand.vmem [shape: f32[16,8], index: 3, kind: input, shape index: {}]
  %s4 = inlined_call_operand.vmem [shape: f32[16,1], index: 4, kind: input, shape index: {}]
  %s5 = inlined_call_operand.vmem [shape: f32[2,16], index: 5, kind: input, shape index: {}]
  %s6 = inlined_call_operand.vmem [shape: f32[2,1], index: 6, kind: input, shape index: {}]
  %s7 = inlined_call_operand.vmem [shape: f32[6,16], index: 7, kind: input, shape index: {}]
  %s8 = inlined_call_operand.vmem [shape: f32[6,1], index: 8, kind: input, shape index: {}]
  %s9 = inlined_call_operand.vmem [shape: f32[2,4,256], index: 9, kind: output, shape index: {}]
  %s10 = sld [smem:[#allocation0]]
  $region69: #{spatial_att_pallas.1} parent=0
    _
  %s12 = ssub.s32 1, %s10
  %s13 = scalar_select 0, %s12, %s10
  loop: start=0, step=1, limit=6
  $region2: #{spatial_att_pallas.1} parent=0 // loop_pre_header
    _
  $region3: #{spatial_att_pallas.1} parent=0 // loop_header
    %s15 = sphi 0, %s19
    %p16 = scmp.ge.s32.totalorder %s15, 6
    %s22 = sphi 0, %s34
    %s23 = sphi 0, %s30
    %s24 = sphi 0, %s22
    %s25 = sphi 0, %s23
    %s26 = sphi 0, %s24
    %s27 = sphi 0, %s25
    %s37 = sphi 0, %s39
    %s40 = sphi 0, %s37
    %s41 = sphi 0, %s40
    %s57 = sphi 0, %s41
    %s65 = sphi 0, %s67
    %s68 = sphi 0, %s65
    %s69 = sphi 0, %s68
    %s85 = sphi 0, %s69
    %s93 = sphi 0, %s95
    %s96 = sphi 0, %s93
    %s97 = sphi 0, %s96
    %s113 = sphi 0, %s97
    %s117 = sphi 0, %s117
    %s119 = sphi 0, %s117
    %s120 = sphi 0, %s119
    %s134 = sphi 0, %s120
    %s138 = sphi 0, %s138
    %s140 = sphi 0, %s138
    %s141 = sphi 0, %s140
    %s155 = sphi 0, %s141
    %s159 = sphi 0, %s159
    %s161 = sphi 0, %s159
    %s162 = sphi 0, %s161
    %s176 = sphi 0, %s162
    %s180 = sphi 0, %s180
    %s182 = sphi 0, %s180
    %s183 = sphi 0, %s182
    %s197 = sphi 0, %s183
    %s201 = sphi 0, %s201
    %s203 = sphi 0, %s201
    %s204 = sphi 0, %s203
    %s218 = sphi 0, %s204
    %s222 = sphi 0, %s222
    %s224 = sphi 0, %s222
    %s225 = sphi 0, %s224
    %s239 = sphi 0, %s225
    %s247 = sphi 0, %s249
    %s250 = sphi 0, %s247
    %s251 = sphi 0, %s250
    %s267 = sphi 0, %s251
  $region4: #{spatial_att_pallas.1} parent=0 // loop_header_branch
    %18 = sbr.rel (%p16) target = $region8
  $region5: #{spatial_att_pallas.1} parent=0 // loop_body
    %s20 = ssub.s32 %s15, 1
    %s21 = ssub.s32 %s15, 2
    %s28 = sadd.s32 1, %s23
    %p29 = scmp.ge.s32.totalorder %s28, 2
    %s30 = scalar_select %p29, 0, %s28
    %s31 = sadd.s32 1, %s22
    %s32 = scalar_select %p29, %s31, %s22
    %p33 = scmp.ge.s32.totalorder %s32, 2
    %s34 = scalar_select %p33, 0, %s32
    %s35 = ssub.s32 %s22, %s34
    %p36 = scmp.eq.s32.totalorder %s35, 0
    %s38 = sadd.s32 %s37, 1
    %s39 = scalar_select %p36, %s37, %s38
    %p42 = pneg %p36
    %p43 = scmp.eq.s32.totalorder %s15, 3
    %p44 = por %p42, %p43
    %p45 = scmp.ne.s32.totalorder %s37, %s40
    %p46 = scmp.eq.s32.totalorder %s15, 0
    %p47 = por %p45, %p46
    %p48 = scmp.ne.s32.totalorder %s37, %s40
    %p49 = scmp.eq.s32.totalorder %s20, 3
    %p50 = por %p48, %p49
    %p51 = scmp.ne.s32.totalorder %s40, %s41
    %p52 = scmp.eq.s32.totalorder %s20, 0
    %p53 = por %p51, %p52
    %p54 = scmp.ne.s32.totalorder %s40, %s41
    %p55 = scmp.eq.s32.totalorder %s21, 3
    %p56 = por %p54, %p55
    %p58 = scmp.ne.s32.totalorder %s41, %s57
    %p59 = scmp.eq.s32.totalorder %s21, 0
    %p60 = por %p58, %p59
    %s61 = ssub.s32 %s22, %s34
    %s62 = ssub.s32 %s23, %s30
    %s63 = sor.u32 %s61, %s62
    %p64 = scmp.eq.s32.totalorder %s63, 0
    %s66 = sadd.s32 %s65, 1
    %s67 = scalar_select %p64, %s65, %s66
    %p70 = pneg %p64
    %p71 = scmp.eq.s32.totalorder %s15, 3
    %p72 = por %p70, %p71
    %p73 = scmp.ne.s32.totalorder %s65, %s68
    %p74 = scmp.eq.s32.totalorder %s15, 0
    %p75 = por %p73, %p74
    %p76 = scmp.ne.s32.totalorder %s65, %s68
    %p77 = scmp.eq.s32.totalorder %s20, 3
    %p78 = por %p76, %p77
    %p79 = scmp.ne.s32.totalorder %s68, %s69
    %p80 = scmp.eq.s32.totalorder %s20, 0
    %p81 = por %p79, %p80
    %p82 = scmp.ne.s32.totalorder %s68, %s69
    %p83 = scmp.eq.s32.totalorder %s21, 3
    %p84 = por %p82, %p83
    %p86 = scmp.ne.s32.totalorder %s69, %s85
    %p87 = scmp.eq.s32.totalorder %s21, 0
    %p88 = por %p86, %p87
    %s89 = ssub.s32 %s22, %s34
    %s90 = ssub.s32 %s23, %s30
    %s91 = sor.u32 %s89, %s90
    %p92 = scmp.eq.s32.totalorder %s91, 0
    %s94 = sadd.s32 %s93, 1
    %s95 = scalar_select %p92, %s93, %s94
    %p98 = pneg %p92
    %p99 = scmp.eq.s32.totalorder %s15, 3
    %p100 = por %p98, %p99
    %p101 = scmp.ne.s32.totalorder %s93, %s96
    %p102 = scmp.eq.s32.totalorder %s15, 0
    %p103 = por %p101, %p102
    %p104 = scmp.ne.s32.totalorder %s93, %s96
    %p105 = scmp.eq.s32.totalorder %s20, 3
    %p106 = por %p104, %p105
    %p107 = scmp.ne.s32.totalorder %s96, %s97
    %p108 = scmp.eq.s32.totalorder %s20, 0
    %p109 = por %p107, %p108
    %p110 = scmp.ne.s32.totalorder %s96, %s97
    %p111 = scmp.eq.s32.totalorder %s21, 3
    %p112 = por %p110, %p111
    %p114 = scmp.ne.s32.totalorder %s97, %s113
    %p115 = scmp.eq.s32.totalorder %s21, 0
    %p116 = por %p114, %p115
    %s118 = sadd.s32 %s117, 1
    %p121 = scmp.eq.s32.totalorder %s15, 3
    %p122 = scmp.ne.s32.totalorder %s117, %s119
    %p123 = scmp.eq.s32.totalorder %s15, 0
    %p124 = por %p122, %p123
    %p125 = scmp.ne.s32.totalorder %s117, %s119
    %p126 = scmp.eq.s32.totalorder %s20, 3
    %p127 = por %p125, %p126
    %p128 = scmp.ne.s32.totalorder %s119, %s120
    %p129 = scmp.eq.s32.totalorder %s20, 0
    %p130 = por %p128, %p129
    %p131 = scmp.ne.s32.totalorder %s119, %s120
    %p132 = scmp.eq.s32.totalorder %s21, 3
    %p133 = por %p131, %p132
    %p135 = scmp.ne.s32.totalorder %s120, %s134
    %p136 = scmp.eq.s32.totalorder %s21, 0
    %p137 = por %p135, %p136
    %s139 = sadd.s32 %s138, 1
    %p142 = scmp.eq.s32.totalorder %s15, 3
    %p143 = scmp.ne.s32.totalorder %s138, %s140
    %p144 = scmp.eq.s32.totalorder %s15, 0
    %p145 = por %p143, %p144
    %p146 = scmp.ne.s32.totalorder %s138, %s140
    %p147 = scmp.eq.s32.totalorder %s20, 3
    %p148 = por %p146, %p147
    %p149 = scmp.ne.s32.totalorder %s140, %s141
    %p150 = scmp.eq.s32.totalorder %s20, 0
    %p151 = por %p149, %p150
    %p152 = scmp.ne.s32.totalorder %s140, %s141
    %p153 = scmp.eq.s32.totalorder %s21, 3
    %p154 = por %p152, %p153
    %p156 = scmp.ne.s32.totalorder %s141, %s155
    %p157 = scmp.eq.s32.totalorder %s21, 0
    %p158 = por %p156, %p157
    %s160 = sadd.s32 %s159, 1
    %p163 = scmp.eq.s32.totalorder %s15, 3
    %p164 = scmp.ne.s32.totalorder %s159, %s161
    %p165 = scmp.eq.s32.totalorder %s15, 0
    %p166 = por %p164, %p165
    %p167 = scmp.ne.s32.totalorder %s159, %s161
    %p168 = scmp.eq.s32.totalorder %s20, 3
    %p169 = por %p167, %p168
    %p170 = scmp.ne.s32.totalorder %s161, %s162
    %p171 = scmp.eq.s32.totalorder %s20, 0
    %p172 = por %p170, %p171
    %p173 = scmp.ne.s32.totalorder %s161, %s162
    %p174 = scmp.eq.s32.totalorder %s21, 3
    %p175 = por %p173, %p174
    %p177 = scmp.ne.s32.totalorder %s162, %s176
    %p178 = scmp.eq.s32.totalorder %s21, 0
    %p179 = por %p177, %p178
    %s181 = sadd.s32 %s180, 1
    %p184 = scmp.eq.s32.totalorder %s15, 3
    %p185 = scmp.ne.s32.totalorder %s180, %s182
    %p186 = scmp.eq.s32.totalorder %s15, 0
    %p187 = por %p185, %p186
    %p188 = scmp.ne.s32.totalorder %s180, %s182
    %p189 = scmp.eq.s32.totalorder %s20, 3
    %p190 = por %p188, %p189
    %p191 = scmp.ne.s32.totalorder %s182, %s183
    %p192 = scmp.eq.s32.totalorder %s20, 0
    %p193 = por %p191, %p192
    %p194 = scmp.ne.s32.totalorder %s182, %s183
    %p195 = scmp.eq.s32.totalorder %s21, 3
    %p196 = por %p194, %p195
    %p198 = scmp.ne.s32.totalorder %s183, %s197
    %p199 = scmp.eq.s32.totalorder %s21, 0
    %p200 = por %p198, %p199
    %s202 = sadd.s32 %s201, 1
    %p205 = scmp.eq.s32.totalorder %s15, 3
    %p206 = scmp.ne.s32.totalorder %s201, %s203
    %p207 = scmp.eq.s32.totalorder %s15, 0
    %p208 = por %p206, %p207
    %p209 = scmp.ne.s32.totalorder %s201, %s203
    %p210 = scmp.eq.s32.totalorder %s20, 3
    %p211 = por %p209, %p210
    %p212 = scmp.ne.s32.totalorder %s203, %s204
    %p213 = scmp.eq.s32.totalorder %s20, 0
    %p214 = por %p212, %p213
    %p215 = scmp.ne.s32.totalorder %s203, %s204
    %p216 = scmp.eq.s32.totalorder %s21, 3
    %p217 = por %p215, %p216
    %p219 = scmp.ne.s32.totalorder %s204, %s218
    %p220 = scmp.eq.s32.totalorder %s21, 0
    %p221 = por %p219, %p220
    %s223 = sadd.s32 %s222, 1
    %p226 = scmp.eq.s32.totalorder %s15, 3
    %p227 = scmp.ne.s32.totalorder %s222, %s224
    %p228 = scmp.eq.s32.totalorder %s15, 0
    %p229 = por %p227, %p228
    %p230 = scmp.ne.s32.totalorder %s222, %s224
    %p231 = scmp.eq.s32.totalorder %s20, 3
    %p232 = por %p230, %p231
    %p233 = scmp.ne.s32.totalorder %s224, %s225
    %p234 = scmp.eq.s32.totalorder %s20, 0
    %p235 = por %p233, %p234
    %p236 = scmp.ne.s32.totalorder %s224, %s225
    %p237 = scmp.eq.s32.totalorder %s21, 3
    %p238 = por %p236, %p237
    %p240 = scmp.ne.s32.totalorder %s225, %s239
    %p241 = scmp.eq.s32.totalorder %s21, 0
    %p242 = por %p240, %p241
    %s243 = ssub.s32 %s22, %s34
    %s244 = ssub.s32 %s23, %s30
    %s245 = sor.u32 %s243, %s244
    %p246 = scmp.eq.s32.totalorder %s245, 0
    %s248 = sadd.s32 %s247, 1
    %s249 = scalar_select %p246, %s247, %s248
    %p252 = pneg %p246
    %p253 = scmp.eq.s32.totalorder %s15, 3
    %p254 = por %p252, %p253
    %p255 = scmp.ne.s32.totalorder %s247, %s250
    %p256 = scmp.eq.s32.totalorder %s15, 0
    %p257 = por %p255, %p256
    %p258 = scmp.ne.s32.totalorder %s247, %s250
    %p259 = scmp.eq.s32.totalorder %s20, 3
    %p260 = por %p258, %p259
    %p261 = scmp.ne.s32.totalorder %s250, %s251
    %p262 = scmp.eq.s32.totalorder %s20, 0
    %p263 = por %p261, %p262
    %p264 = scmp.ne.s32.totalorder %s250, %s251
    %p265 = scmp.eq.s32.totalorder %s21, 3
    %p266 = por %p264, %p265
    %p268 = scmp.ne.s32.totalorder %s251, %s267
    %p269 = scmp.eq.s32.totalorder %s21, 0
    %p270 = por %p268, %p269
    %p271 = scmp.le.s32.totalorder 1, %s15
    %p272 = scmp.lt.s32.totalorder %s15, 5
    %p273 = pnand %p271, %p272
    %p274 = pneg %p273
    // Predicated region
    $region9: #{spatial_att_pallas.1} parent=5 // pred_check
      _
    $region10: #{spatial_att_pallas.1} parent=5 // pred_check_branch
      %276 = sbr.rel (%p273) target = $region12
    $region11: #{spatial_att_pallas.1} parent=5 // pred_region
      %s277 = ssub.s32 %s15, 1
      // Predicated region
      $region13: #{spatial_att_pallas.1} parent=11 // pred_check
        %p278 = pneg %p130
      $region14: #{spatial_att_pallas.1} parent=11 // pred_check_branch
        %280 = sbr.rel (%p278) target = $region16
      $region15: #{spatial_att_pallas.1} parent=11 // pred_region
        _
      $region16: #{spatial_att_pallas.1} parent=11 // pred_fallthru
        _
      // Predicated region
      $region17: #{spatial_att_pallas.1} parent=11 // pred_check
        %p281 = pneg %p151
      $region18: #{spatial_att_pallas.1} parent=11 // pred_check_branch
        %283 = sbr.rel (%p281) target = $region20
      $region19: #{spatial_att_pallas.1} parent=11 // pred_region
        _
      $region20: #{spatial_att_pallas.1} parent=11 // pred_fallthru
        _
      // Predicated region
      $region21: #{spatial_att_pallas.1} parent=11 // pred_check
        %p284 = pneg %p172
      $region22: #{spatial_att_pallas.1} parent=11 // pred_check_branch
        %286 = sbr.rel (%p284) target = $region24
      $region23: #{spatial_att_pallas.1} parent=11 // pred_region
        _
      $region24: #{spatial_att_pallas.1} parent=11 // pred_fallthru
        _
      // Predicated region
      $region25: #{spatial_att_pallas.1} parent=11 // pred_check
        %p287 = pneg %p193
      $region26: #{spatial_att_pallas.1} parent=11 // pred_check_branch
        %289 = sbr.rel (%p287) target = $region28
      $region27: #{spatial_att_pallas.1} parent=11 // pred_region
        _
      $region28: #{spatial_att_pallas.1} parent=11 // pred_fallthru
        _
      // Predicated region
      $region29: #{spatial_att_pallas.1} parent=11 // pred_check
        %p290 = pneg %p214
      $region30: #{spatial_att_pallas.1} parent=11 // pred_check_branch
        %292 = sbr.rel (%p290) target = $region32
      $region31: #{spatial_att_pallas.1} parent=11 // pred_region
        _
      $region32: #{spatial_att_pallas.1} parent=11 // pred_fallthru
        _
      // Predicated region
      $region33: #{spatial_att_pallas.1} parent=11 // pred_check
        %p293 = pneg %p235
      $region34: #{spatial_att_pallas.1} parent=11 // pred_check_branch
        %295 = sbr.rel (%p293) target = $region36
      $region35: #{spatial_att_pallas.1} parent=11 // pred_region
        _
      $region36: #{spatial_att_pallas.1} parent=11 // pred_fallthru
        _
    $region12: #{spatial_att_pallas.1} parent=5 // pred_fallthru
      _
    %p296 = scmp.lt.s32.totalorder %s15, 4
    // Predicated region
    $region37: #{spatial_att_pallas.1} parent=5 // pred_check
      %p297 = pneg %p296
    $region38: #{spatial_att_pallas.1} parent=5 // pred_check_branch
      %299 = sbr.rel (%p297) target = $region40
    $region39: #{spatial_att_pallas.1} parent=5 // pred_region
      // Predicated region
      $region41: #{spatial_att_pallas.1} parent=39 // pred_check
        %p300 = pneg %p47
      $region42: #{spatial_att_pallas.1} parent=39 // pred_check_branch
        %302 = sbr.rel (%p300) target = $region44
      $region43: #{spatial_att_pallas.1} parent=39 // pred_region
        %p303 = scmp.lt.s32.totalorder %s22, 1
        %s304 = scalar_select %p303, %s22, 1
        %s305 = smul.addr %s304, 2
        %s306 = smul.addr %s305, 8
        %s307 = scalar_lea.vmem %s0, %s306
      $region44: #{spatial_att_pallas.1} parent=39 // pred_fallthru
        _
      // Predicated region
      $region45: #{spatial_att_pallas.1} parent=39 // pred_check
        %p308 = pneg %p75
      $region46: #{spatial_att_pallas.1} parent=39 // pred_check_branch
        %310 = sbr.rel (%p308) target = $region48
      $region47: #{spatial_att_pallas.1} parent=39 // pred_region
        %p311 = scmp.lt.s32.totalorder %s22, 1
        %s312 = scalar_select %p311, %s22, 1
        %p313 = scmp.lt.s32.totalorder %s23, 1
        %s314 = scalar_select %p313, %s23, 1
        %s315 = smul.addr %s312, 2
        %s316 = sadd.s32 %s314, %s315
        %s317 = smul.addr %s316, 8
        %s318 = scalar_lea.vmem %s1, %s317
      $region48: #{spatial_att_pallas.1} parent=39 // pred_fallthru
        _
      // Predicated region
      $region49: #{spatial_att_pallas.1} parent=39 // pred_check
        %p319 = pneg %p103
      $region50: #{spatial_att_pallas.1} parent=39 // pred_check_branch
        %321 = sbr.rel (%p319) target = $region52
      $region51: #{spatial_att_pallas.1} parent=39 // pred_region
        %p322 = scmp.lt.s32.totalorder %s22, 1
        %s323 = scalar_select %p322, %s22, 1
        %p324 = scmp.lt.s32.totalorder %s23, 1
        %s325 = scalar_select %p324, %s23, 1
        %s326 = smul.addr %s323, 2
        %s327 = sadd.s32 %s325, %s326
        %s328 = smul.addr %s327, 4
        %s329 = scalar_lea.vmem %s2, %s328
      $region52: #{spatial_att_pallas.1} parent=39 // pred_fallthru
        _
    $region40: #{spatial_att_pallas.1} parent=5 // pred_fallthru
      _
    %p330 = scmp.le.s32.totalorder 1, %s15
    %p331 = scmp.lt.s32.totalorder %s15, 5
    %p332 = pnand %p330, %p331
    %p333 = pneg %p332
    // Predicated region
    $region53: #{spatial_att_pallas.1} parent=5 // pred_check
      _
    $region54: #{spatial_att_pallas.1} parent=5 // pred_check_branch
      %335 = sbr.rel (%p332) target = $region56
    $region55: #{spatial_att_pallas.1} parent=5 // pred_region
      %s336 = ssub.s32 %s15, 1
      %p337 = scmp.lt.s32.totalorder %s24, 1
      %s338 = scalar_select %p337, %s24, 1
      %s339 = smul.addr %s338, 2
      %s340 = smul.addr %s339, 8
      %s341 = scalar_lea.vmem %s0, %s340
      %p342 = pneg %p53
      %p343 = pneg %p50
      %p344 = scmp.lt.s32.totalorder %s24, 1
      %s345 = scalar_select %p344, %s24, 1
      %p346 = scmp.lt.s32.totalorder %s25, 1
      %s347 = scalar_select %p346, %s25, 1
      %s348 = smul.addr %s345, 2
      %s349 = sadd.s32 %s347, %s348
      %s350 = smul.addr %s349, 8
      %s351 = scalar_lea.vmem %s1, %s350
      %p352 = pneg %p81
      %p353 = pneg %p78
      %p354 = scmp.lt.s32.totalorder %s24, 1
      %s355 = scalar_select %p354, %s24, 1
      %p356 = scmp.lt.s32.totalorder %s25, 1
      %s357 = scalar_select %p356, %s25, 1
      %s358 = smul.addr %s355, 2
      %s359 = sadd.s32 %s357, %s358
      %s360 = smul.addr %s359, 4
      %s361 = scalar_lea.vmem %s2, %s360
      %p362 = pneg %p109
      %p363 = pneg %p106
      %p364 = pneg %p130
      %p365 = pneg %p127
      %p366 = pneg %p151
      %p367 = pneg %p148
      %p368 = pneg %p172
      %p369 = pneg %p169
      %p370 = pneg %p193
      %p371 = pneg %p190
      %p372 = pneg %p214
      %p373 = pneg %p211
      %p374 = pneg %p235
      %p375 = pneg %p232
      %p376 = pneg %p263
      %p377 = pneg %p260
      %p378 = scmp.lt.s32.totalorder %s24, 1
      %s379 = scalar_select %p378, %s24, 1
      %p380 = scmp.lt.s32.totalorder %s25, 1
      %s381 = scalar_select %p380, %s25, 1
      %s382 = smul.addr %s379, 2
      %s383 = sadd.s32 %s381, %s382
      %s384 = smul.addr %s383, 4
      %s385 = scalar_lea.vmem %s9, %s384
      %p386 = scmp.lt.s32.totalorder %s24, 1
      %s387 = scalar_select %p386, %s24, 1
      %s388 = smul.addr %s387, 2
      %s389 = smul.addr %s388, 8
      %s390 = scalar_lea.vmem %s0, %s389
      %p391 = scmp.lt.s32.totalorder %s24, 1
      %s392 = scalar_select %p391, %s24, 1
      %p393 = scmp.lt.s32.totalorder %s25, 1
      %s394 = scalar_select %p393, %s25, 1
      %s395 = smul.addr %s392, 2
      %s396 = sadd.s32 %s394, %s395
      %s397 = smul.addr %s396, 8
      %s398 = scalar_lea.vmem %s1, %s397
      %p399 = scmp.lt.s32.totalorder %s24, 1
      %s400 = scalar_select %p399, %s24, 1
      %p401 = scmp.lt.s32.totalorder %s25, 1
      %s402 = scalar_select %p401, %s25, 1
      %s403 = smul.addr %s400, 2
      %s404 = sadd.s32 %s402, %s403
      %s405 = smul.addr %s404, 4
      %s406 = scalar_lea.vmem %s2, %s405
      %p407 = scmp.lt.s32.totalorder %s24, 1
      %s408 = scalar_select %p407, %s24, 1
      %p409 = scmp.lt.s32.totalorder %s25, 1
      %s410 = scalar_select %p409, %s25, 1
      %s411 = smul.addr %s408, 2
      %s412 = sadd.s32 %s410, %s411
      %s413 = smul.addr %s412, 4
      %s414 = scalar_lea.vmem %s9, %s413
      %v416 = vld [vmem:[%s3] sm:$0xff]
      %v417 = vld [vmem:[%s3 + $0x8] sm:$0xff]
      %v418 = vld [vmem:[%s390] sm:$0xff]
      %v419 = vld [vmem:[%s390 + $0x8] sm:$0xff]
      %v420 = vld [vmem:[%s4] sm:$0xff]
      %v421 = vld [vmem:[%s4 + $0x8] sm:$0xff]
      %423 = vset.pattern.permute.xlu0 0
      %424 = vperm.xlu0 %423, %v420
      %v425 = vpop.permute.xlu0 %424
      %428 = vset.pattern.permute.xlu0 0
      %429 = vperm.xlu0 %428, %v421
      %v430 = vpop.permute.xlu0 %429
      %vm432 = vcmask 64512
      %v434 = vsel %vm432, %v416, 0
      %v437 = vsel %vm432, %v417, 0
      %439 = vmatprep.subr.mxu0 0.0
      %440 = vmatpush1.msra.mxu0 0.0
      %441 = vmatprep.subr.mxu0 0.0
      %442 = vmatpush1.msra.mxu0 0.0
      %443 = vmatprep.subr.mxu0 0.0
      %444 = vmatpush1.msra.mxu0 0.0
      %445 = vmatprep.subr.mxu0 0.0
      %446 = vmatpush1.msra.mxu0 0.0
      %447 = vmatprep.subr.mxu0 0.0
      %448 = vmatpush1.msra.mxu0 0.0
      %449 = vmatprep.subr.mxu0 0.0
      %450 = vmatpush1.msra.mxu0 0.0
      %451 = vmatprep.subr.mxu0 0.0
      %452 = vmatpush1.msra.mxu0 0.0
      %453 = vmatprep.subr.mxu0 0.0
      %454 = vmatpush1.msra.mxu0 0.0
      %455 = vmatprep.subr.mxu0 0.0
      %456 = vmatpush1.msra.mxu0 0.0
      %457 = vmatprep.subr.mxu0 0.0
      %458 = vmatpush1.msra.mxu0 0.0
      %459 = vmatprep.subr.mxu0 0.0
      %460 = vmatpush1.msra.mxu0 0.0
      %461 = vmatprep.subr.mxu0 0.0
      %462 = vmatpush1.msra.mxu0 0.0
      %463 = vmatprep.subr.mxu0 0.0
      %464 = vmatpush1.msra.mxu0 0.0
      %465 = vmatprep.subr.mxu0 0.0
      %466 = vmatpush1.msra.mxu0 0.0
      %467 = vmatprep.subr.mxu0 0.0
      %468 = vmatpush1.msra.mxu0 0.0
      %469 = vmatprep.subr.mxu0 %v419
      %470 = vmatpush1.msra.mxu0 %v418
      %471 = vmatprep.subr.mxu0 0.0
      %472 = vmatpush2.msra.mxu0 0.0
      %473 = vmatprep.subr.mxu0 0.0
      %474 = vmatpush2.msra.mxu0 0.0
      %475 = vmatprep.subr.mxu0 0.0
      %476 = vmatpush2.msra.mxu0 0.0
      %477 = vmatprep.subr.mxu0 0.0
      %478 = vmatpush2.msra.mxu0 0.0
      %479 = vmatprep.subr.mxu0 0.0
      %480 = vmatpush2.msra.mxu0 0.0
      %481 = vmatprep.subr.mxu0 0.0
      %482 = vmatpush2.msra.mxu0 0.0
      %483 = vmatprep.subr.mxu0 0.0
      %484 = vmatpush2.msra.mxu0 0.0
      %485 = vmatprep.subr.mxu0 0.0
      %486 = vmatpush2.msra.mxu0 0.0
      %487 = vmatprep.subr.mxu0 0.0
      %488 = vmatpush2.msra.mxu0 0.0
      %489 = vmatprep.subr.mxu0 0.0
      %490 = vmatpush2.msra.mxu0 0.0
      %491 = vmatprep.subr.mxu0 0.0
      %492 = vmatpush2.msra.mxu0 0.0
      %493 = vmatprep.subr.mxu0 0.0
      %494 = vmatpush2.msra.mxu0 0.0
      %495 = vmatprep.subr.mxu0 0.0
      %496 = vmatpush2.msra.mxu0 0.0
      %497 = vmatprep.subr.mxu0 0.0
      %498 = vmatpush2.msra.mxu0 0.0
      %499 = vmatprep.subr.mxu0 0.0
      %500 = vmatpush2.msra.mxu0 0.0
      %501 = vmatprep.subr.mxu0 0.0
      %502 = vmatpush2.msra.mxu0 0.0
      %503 = vmatprep.mubr.f32.mxu0 0.0
      %504 = vmatmul.mubr.f32.gmra.mxu0 %v434
      %v505 = vpop.f32.mrf.mxu0
      %v506 = vadd.f32 %v425, %v505
      %v507 = vpop.f32.mrf.mxu0
      %v508 = vadd.f32 %v425, %v507
      %509 = vmatprep.mubr.f32.mxu0 0.0
      %510 = vmatmul.mubr.f32.gmra.mxu0 %v437
      %v511 = vpop.f32.mrf.mxu0
      %v512 = vadd.f32 %v430, %v511
      %v513 = vpop.f32.mrf.mxu0
      %v514 = vadd.f32 %v430, %v513
      %515 = vdwg.mxu0
      %v516 = vmax.f32 %v506, 0.0
      %v517 = vmax.f32 %v508, 0.0
      %v518 = vmax.f32 %v512, 0.0
      %v519 = vmax.f32 %v514, 0.0
      %v520 = vld [vmem:[%s7] sm:$0x3f]
      %v521 = vld [vmem:[%s8] sm:$0x3f]
      %523 = vset.pattern.permute.xlu0 0
      %524 = vperm.xlu0 %523, %v521
      %v525 = vpop.permute.xlu0 %524
      %vm527 = vcmask 130048
      %v529 = vsel %vm527, %v520, 0
      %531 = vmatprep.subr.mxu0 0.0
      %532 = vmatpush1.msra.mxu0 0.0
      %533 = vmatprep.subr.mxu0 0.0
      %534 = vmatpush1.msra.mxu0 0.0
      %535 = vmatprep.subr.mxu0 0.0
      %536 = vmatpush1.msra.mxu0 0.0
      %537 = vmatprep.subr.mxu0 0.0
      %538 = vmatpush1.msra.mxu0 0.0
      %539 = vmatprep.subr.mxu0 0.0
      %540 = vmatpush1.msra.mxu0 0.0
      %541 = vmatprep.subr.mxu0 0.0
      %542 = vmatpush1.msra.mxu0 0.0
      %543 = vmatprep.subr.mxu0 0.0
      %544 = vmatpush1.msra.mxu0 0.0
      %545 = vmatprep.subr.mxu0 0.0
      %546 = vmatpush1.msra.mxu0 0.0
      %547 = vmatprep.subr.mxu0 0.0
      %548 = vmatpush1.msra.mxu0 0.0
      %549 = vmatprep.subr.mxu0 0.0
      %550 = vmatpush1.msra.mxu0 0.0
      %551 = vmatprep.subr.mxu0 0.0
      %552 = vmatpush1.msra.mxu0 0.0
      %553 = vmatprep.subr.mxu0 0.0
      %554 = vmatpush1.msra.mxu0 0.0
      %555 = vmatprep.subr.mxu0 0.0
      %556 = vmatpush1.msra.mxu0 0.0
      %557 = vmatprep.subr.mxu0 0.0
      %558 = vmatpush1.msra.mxu0 0.0
      %559 = vmatprep.subr.mxu0 %v519
      %560 = vmatpush1.msra.mxu0 %v518
      %561 = vmatprep.subr.mxu0 %v517
      %562 = vmatpush1.msra.mxu0 %v516
      %563 = vmatprep.subr.mxu0 0.0
      %564 = vmatpush2.msra.mxu0 0.0
      %565 = vmatprep.subr.mxu0 0.0
      %566 = vmatpush2.msra.mxu0 0.0
      %567 = vmatprep.subr.mxu0 0.0
      %568 = vmatpush2.msra.mxu0 0.0
      %569 = vmatprep.subr.mxu0 0.0
      %570 = vmatpush2.msra.mxu0 0.0
      %571 = vmatprep.subr.mxu0 0.0
      %572 = vmatpush2.msra.mxu0 0.0
      %573 = vmatprep.subr.mxu0 0.0
      %574 = vmatpush2.msra.mxu0 0.0
      %575 = vmatprep.subr.mxu0 0.0
      %576 = vmatpush2.msra.mxu0 0.0
      %577 = vmatprep.subr.mxu0 0.0
      %578 = vmatpush2.msra.mxu0 0.0
      %579 = vmatprep.subr.mxu0 0.0
      %580 = vmatpush2.msra.mxu0 0.0
      %581 = vmatprep.subr.mxu0 0.0
      %582 = vmatpush2.msra.mxu0 0.0
      %583 = vmatprep.subr.mxu0 0.0
      %584 = vmatpush2.msra.mxu0 0.0
      %585 = vmatprep.subr.mxu0 0.0
      %586 = vmatpush2.msra.mxu0 0.0
      %587 = vmatprep.subr.mxu0 0.0
      %588 = vmatpush2.msra.mxu0 0.0
      %589 = vmatprep.subr.mxu0 0.0
      %590 = vmatpush2.msra.mxu0 0.0
      %591 = vmatprep.subr.mxu0 0.0
      %592 = vmatpush2.msra.mxu0 0.0
      %593 = vmatprep.subr.mxu0 0.0
      %594 = vmatpush2.msra.mxu0 0.0
      %595 = vmatprep.mubr.f32.mxu0 0.0
      %596 = vmatmul.mubr.f32.gmra.mxu0 %v529
      %v597 = vpop.f32.mrf.mxu0
      %v598 = vadd.f32 %v525, %v597
      %v599 = vpop.f32.mrf.mxu0
      %v600 = vadd.f32 %v525, %v599
      %601 = vdwg.mxu0
      %v602 = vld [vmem:[%s398] sm:$0xff]
      %603 = vmatprep.subr.mxu0 0.0
      %604 = vmatpush1.msra.mxu0 0.0
      %605 = vmatprep.subr.mxu0 0.0
      %606 = vmatpush1.msra.mxu0 0.0
      %607 = vmatprep.subr.mxu0 0.0
      %608 = vmatpush1.msra.mxu0 0.0
      %609 = vmatprep.subr.mxu0 0.0
      %610 = vmatpush1.msra.mxu0 0.0
      %611 = vmatprep.subr.mxu0 0.0
      %612 = vmatpush1.msra.mxu0 0.0
      %613 = vmatprep.subr.mxu0 0.0
      %614 = vmatpush1.msra.mxu0 0.0
      %615 = vmatprep.subr.mxu0 0.0
      %616 = vmatpush1.msra.mxu0 0.0
      %617 = vmatprep.subr.mxu0 0.0
      %618 = vmatpush1.msra.mxu0 0.0
      %619 = vmatprep.subr.mxu0 0.0
      %620 = vmatpush1.msra.mxu0 0.0
      %621 = vmatprep.subr.mxu0 0.0
      %622 = vmatpush1.msra.mxu0 0.0
      %623 = vmatprep.subr.mxu0 0.0
      %624 = vmatpush1.msra.mxu0 0.0
      %625 = vmatprep.subr.mxu0 0.0
      %626 = vmatpush1.msra.mxu0 0.0
      %627 = vmatprep.subr.mxu0 0.0
      %628 = vmatpush1.msra.mxu0 0.0
      %629 = vmatprep.subr.mxu0 0.0
      %630 = vmatpush1.msra.mxu0 0.0
      %631 = vmatprep.subr.mxu0 0.0
      %632 = vmatpush1.msra.mxu0 0.0
      %633 = vmatprep.subr.mxu0 0.0
      %634 = vmatpush1.msra.mxu0 %v602
      %635 = vmatprep.subr.mxu0 0.0
      %636 = vmatpush2.msra.mxu0 0.0
      %637 = vmatprep.subr.mxu0 0.0
      %638 = vmatpush2.msra.mxu0 0.0
      %639 = vmatprep.subr.mxu0 0.0
      %640 = vmatpush2.msra.mxu0 0.0
      %641 = vmatprep.subr.mxu0 0.0
      %642 = vmatpush2.msra.mxu0 0.0
      %643 = vmatprep.subr.mxu0 0.0
      %644 = vmatpush2.msra.mxu0 0.0
      %645 = vmatprep.subr.mxu0 0.0
      %646 = vmatpush2.msra.mxu0 0.0
      %647 = vmatprep.subr.mxu0 0.0
      %648 = vmatpush2.msra.mxu0 0.0
      %649 = vmatprep.subr.mxu0 0.0
      %650 = vmatpush2.msra.mxu0 0.0
      %651 = vmatprep.subr.mxu0 0.0
      %652 = vmatpush2.msra.mxu0 0.0
      %653 = vmatprep.subr.mxu0 0.0
      %654 = vmatpush2.msra.mxu0 0.0
      %655 = vmatprep.subr.mxu0 0.0
      %656 = vmatpush2.msra.mxu0 0.0
      %657 = vmatprep.subr.mxu0 0.0
      %658 = vmatpush2.msra.mxu0 0.0
      %659 = vmatprep.subr.mxu0 0.0
      %660 = vmatpush2.msra.mxu0 0.0
      %661 = vmatprep.subr.mxu0 0.0
      %662 = vmatpush2.msra.mxu0 0.0
      %663 = vmatprep.subr.mxu0 0.0
      %664 = vmatpush2.msra.mxu0 0.0
      %665 = vmatprep.subr.mxu0 0.0
      %666 = vmatpush2.msra.mxu0 0.0
      %667 = vmatprep.mubr.f32.mxu0 0.0
      %668 = vmatmul.mubr.f32.gmra.mxu0 %v434
      %v669 = vpop.f32.mrf.mxu0
      %v670 = vadd.f32 %v425, %v669
      %v671 = vpop.f32.mrf.mxu0
      %672 = vmatprep.mubr.f32.mxu0 0.0
      %673 = vmatmul.mubr.f32.gmra.mxu0 %v437
      %v674 = vpop.f32.mrf.mxu0
      %v675 = vadd.f32 %v430, %v674
      %v676 = vpop.f32.mrf.mxu0
      %677 = vdwg.mxu0
      %v678 = vmax.f32 %v670, 0.0
      %v679 = vmax.f32 %v675, 0.0
      %v680 = vld [vmem:[%s5] sm:$0x3]
      %v681 = vld [vmem:[%s6] sm:$0x3]
      %683 = vset.pattern.permute.xlu0 0
      %684 = vperm.xlu0 %683, %v681
      %v685 = vpop.permute.xlu0 %684
      %v688 = vsel %vm527, %v680, 0
      %690 = vmatprep.subr.mxu0 0.0
      %691 = vmatpush1.msra.mxu0 0.0
      %692 = vmatprep.subr.mxu0 0.0
      %693 = vmatpush1.msra.mxu0 0.0
      %694 = vmatprep.subr.mxu0 0.0
      %695 = vmatpush1.msra.mxu0 0.0
      %696 = vmatprep.subr.mxu0 0.0
      %697 = vmatpush1.msra.mxu0 0.0
      %698 = vmatprep.subr.mxu0 0.0
      %699 = vmatpush1.msra.mxu0 0.0
      %700 = vmatprep.subr.mxu0 0.0
      %701 = vmatpush1.msra.mxu0 0.0
      %702 = vmatprep.subr.mxu0 0.0
      %703 = vmatpush1.msra.mxu0 0.0
      %704 = vmatprep.subr.mxu0 0.0
      %705 = vmatpush1.msra.mxu0 0.0
      %706 = vmatprep.subr.mxu0 0.0
      %707 = vmatpush1.msra.mxu0 0.0
      %708 = vmatprep.subr.mxu0 0.0
      %709 = vmatpush1.msra.mxu0 0.0
      %710 = vmatprep.subr.mxu0 0.0
      %711 = vmatpush1.msra.mxu0 0.0
      %712 = vmatprep.subr.mxu0 0.0
      %713 = vmatpush1.msra.mxu0 0.0
      %714 = vmatprep.subr.mxu0 0.0
      %715 = vmatpush1.msra.mxu0 0.0
      %716 = vmatprep.subr.mxu0 0.0
      %717 = vmatpush1.msra.mxu0 0.0
      %718 = vmatprep.subr.mxu0 0.0
      %719 = vmatpush1.msra.mxu0 %v679
      %720 = vmatprep.subr.mxu0 0.0
      %721 = vmatpush1.msra.mxu0 %v678
      %722 = vmatprep.subr.mxu0 0.0
      %723 = vmatpush2.msra.mxu0 0.0
      %724 = vmatprep.subr.mxu0 0.0
      %725 = vmatpush2.msra.mxu0 0.0
      %726 = vmatprep.subr.mxu0 0.0
      %727 = vmatpush2.msra.mxu0 0.0
      %728 = vmatprep.subr.mxu0 0.0
      %729 = vmatpush2.msra.mxu0 0.0
      %730 = vmatprep.subr.mxu0 0.0
      %731 = vmatpush2.msra.mxu0 0.0
      %732 = vmatprep.subr.mxu0 0.0
      %733 = vmatpush2.msra.mxu0 0.0
      %734 = vmatprep.subr.mxu0 0.0
      %735 = vmatpush2.msra.mxu0 0.0
      %736 = vmatprep.subr.mxu0 0.0
      %737 = vmatpush2.msra.mxu0 0.0
      %738 = vmatprep.subr.mxu0 0.0
      %739 = vmatpush2.msra.mxu0 0.0
      %740 = vmatprep.subr.mxu0 0.0
      %741 = vmatpush2.msra.mxu0 0.0
      %742 = vmatprep.subr.mxu0 0.0
      %743 = vmatpush2.msra.mxu0 0.0
      %744 = vmatprep.subr.mxu0 0.0
      %745 = vmatpush2.msra.mxu0 0.0
      %746 = vmatprep.subr.mxu0 0.0
      %747 = vmatpush2.msra.mxu0 0.0
      %748 = vmatprep.subr.mxu0 0.0
      %749 = vmatpush2.msra.mxu0 0.0
      %750 = vmatprep.subr.mxu0 0.0
      %751 = vmatpush2.msra.mxu0 0.0
      %752 = vmatprep.subr.mxu0 0.0
      %753 = vmatpush2.msra.mxu0 0.0
      %754 = vmatprep.mubr.f32.mxu0 0.0
      %755 = vmatmul.mubr.f32.gmra.mxu0 %v688
      %v756 = vpop.f32.mrf.mxu0
      %v757 = vadd.f32 %v685, %v756
      %v758 = vpop.f32.mrf.mxu0
      %759 = vdwg.mxu0
      %v760 = vpack.c.bf16 %v757, %v757
      %v761 = vpack.c.bf16 %v598, %v598
      %v762 = vpack.c.bf16 %v600, %v600
      %763 = vxpose.xlu0.c.b16.start [1/8] %v760, 128
      %764 = vxpose.xlu0.c.b16.cont [2/8] 0, 128
      %765 = vxpose.xlu0.c.b16.cont [3/8] 0, 128
      %766 = vxpose.xlu0.c.b16.cont [4/8] 0, 128
      %767 = vxpose.xlu0.c.b16.cont [5/8] 0, 128
      %768 = vxpose.xlu0.c.b16.cont [6/8] 0, 128
      %769 = vxpose.xlu0.c.b16.cont [7/8] 0, 128
      %770 = vxpose.xlu0.c.b16.end [8/8] 0, 128
      %v771 = vpop.trf.xlu0
      %v772 = vpop.trf.xlu0
      %v773 = vpop.trf.xlu0
      %v774 = vpop.trf.xlu0
      %v775 = vpop.trf.xlu0
      %v776 = vpop.trf.xlu0
      %v777 = vpop.trf.xlu0
      %v778 = vpop.trf.xlu0
      %vm779 = vcmask 15360
      %v781 = vsel %vm779, %v771, 0
      %v784 = vsel %vm779, %v772, 0
      %v787 = vsel %vm779, %v773, 0
      %v790 = vsel %vm779, %v774, 0
      %v793 = vsel %vm779, %v775, 0
      %v796 = vsel %vm779, %v776, 0
      %v799 = vsel %vm779, %v777, 0
      %v802 = vsel %vm779, %v778, 0
      %vm804 = vcmask 1040384
      %v806 = vsel %vm804, %v761, 0
      %v809 = vsel %vm804, %v762, 0
      %811 = vmatprep.subr.bf16.mxu0 0
      %812 = vmatpush1.bf16.msra.mxu0 0
      %813 = vmatprep.subr.bf16.mxu0 0
      %814 = vmatpush1.bf16.msra.mxu0 0
      %815 = vmatprep.subr.bf16.mxu0 0
      %816 = vmatpush1.bf16.msra.mxu0 0
      %817 = vmatprep.subr.bf16.mxu0 0
      %818 = vmatpush1.bf16.msra.mxu0 0
      %819 = vmatprep.subr.bf16.mxu0 0
      %820 = vmatpush1.bf16.msra.mxu0 0
      %821 = vmatprep.subr.bf16.mxu0 0
      %822 = vmatpush1.bf16.msra.mxu0 0
      %823 = vmatprep.subr.bf16.mxu0 0
      %824 = vmatpush1.bf16.msra.mxu0 0
      %825 = vmatprep.subr.bf16.mxu0 %v809
      %826 = vmatpush1.bf16.msra.mxu0 %v806
      %827 = vmatprep.subr.bf16.mxu0 0
      %828 = vmatpush2.bf16.msra.mxu0 0
      %829 = vmatprep.subr.bf16.mxu0 0
      %830 = vmatpush2.bf16.msra.mxu0 0
      %831 = vmatprep.subr.bf16.mxu0 0
      %832 = vmatpush2.bf16.msra.mxu0 0
      %833 = vmatprep.subr.bf16.mxu0 0
      %834 = vmatpush2.bf16.msra.mxu0 0
      %835 = vmatprep.subr.bf16.mxu0 0
      %836 = vmatpush2.bf16.msra.mxu0 0
      %837 = vmatprep.subr.bf16.mxu0 0
      %838 = vmatpush2.bf16.msra.mxu0 0
      %839 = vmatprep.subr.bf16.mxu0 0
      %840 = vmatpush2.bf16.msra.mxu0 0
      %841 = vmatprep.subr.bf16.mxu0 0
      %842 = vmatpush2.bf16.msra.mxu0 0
      %843 = vmatprep.mubr.bf16.mxu0 0
      %844 = vmatmul.mubr.bf16.gmra.mxu0 %v781
      %v845 = vpop.f32.mrf.mxu0
      %v846 = vadd.f32 0.0, %v845
      %v847 = vpop.f32.mrf.mxu0
      %v848 = vadd.f32 0.0, %v847
      %v849 = vpop.f32.mrf.mxu0
      %v850 = vadd.f32 0.0, %v849
      %v851 = vpop.f32.mrf.mxu0
      %v852 = vadd.f32 0.0, %v851
      %853 = vmatprep.mubr.bf16.mxu0 0
      %854 = vmatmul.mubr.bf16.gmra.mxu0 %v784
      %v855 = vpop.f32.mrf.mxu0
      %v856 = vadd.f32 0.0, %v855
      %v857 = vpop.f32.mrf.mxu0
      %v858 = vadd.f32 0.0, %v857
      %v859 = vpop.f32.mrf.mxu0
      %v860 = vadd.f32 0.0, %v859
      %v861 = vpop.f32.mrf.mxu0
      %v862 = vadd.f32 0.0, %v861
      %863 = vmatprep.mubr.bf16.mxu0 0
      %864 = vmatmul.mubr.bf16.gmra.mxu0 %v787
      %v865 = vpop.f32.mrf.mxu0
      %v866 = vadd.f32 0.0, %v865
      %v867 = vpop.f32.mrf.mxu0
      %v868 = vadd.f32 0.0, %v867
      %v869 = vpop.f32.mrf.mxu0
      %v870 = vadd.f32 0.0, %v869
      %v871 = vpop.f32.mrf.mxu0
      %v872 = vadd.f32 0.0, %v871
      %873 = vmatprep.mubr.bf16.mxu0 0
      %874 = vmatmul.mubr.bf16.gmra.mxu0 %v790
      %v875 = vpop.f32.mrf.mxu0
      %v876 = vadd.f32 0.0, %v875
      %v877 = vpop.f32.mrf.mxu0
      %v878 = vadd.f32 0.0, %v877
      %v879 = vpop.f32.mrf.mxu0
      %v880 = vadd.f32 0.0, %v879
      %v881 = vpop.f32.mrf.mxu0
      %v882 = vadd.f32 0.0, %v881
      %883 = vmatprep.mubr.bf16.mxu0 0
      %884 = vmatmul.mubr.bf16.gmra.mxu0 %v793
      %v885 = vpop.f32.mrf.mxu0
      %v886 = vadd.f32 0.0, %v885
      %v887 = vpop.f32.mrf.mxu0
      %v888 = vadd.f32 0.0, %v887
      %v889 = vpop.f32.mrf.mxu0
      %v890 = vadd.f32 0.0, %v889
      %v891 = vpop.f32.mrf.mxu0
      %v892 = vadd.f32 0.0, %v891
      %893 = vmatprep.mubr.bf16.mxu0 0
      %894 = vmatmul.mubr.bf16.gmra.mxu0 %v796
      %v895 = vpop.f32.mrf.mxu0
      %v896 = vadd.f32 0.0, %v895
      %v897 = vpop.f32.mrf.mxu0
      %v898 = vadd.f32 0.0, %v897
      %v899 = vpop.f32.mrf.mxu0
      %v900 = vadd.f32 0.0, %v899
      %v901 = vpop.f32.mrf.mxu0
      %v902 = vadd.f32 0.0, %v901
      %903 = vmatprep.mubr.bf16.mxu0 0
      %904 = vmatmul.mubr.bf16.gmra.mxu0 %v799
      %v905 = vpop.f32.mrf.mxu0
      %v906 = vadd.f32 0.0, %v905
      %v907 = vpop.f32.mrf.mxu0
      %v908 = vadd.f32 0.0, %v907
      %v909 = vpop.f32.mrf.mxu0
      %v910 = vadd.f32 0.0, %v909
      %v911 = vpop.f32.mrf.mxu0
      %v912 = vadd.f32 0.0, %v911
      %913 = vmatprep.mubr.bf16.mxu0 0
      %914 = vmatmul.mubr.bf16.gmra.mxu0 %v802
      %v915 = vpop.f32.mrf.mxu0
      %v916 = vadd.f32 0.0, %v915
      %v917 = vpop.f32.mrf.mxu0
      %v918 = vadd.f32 0.0, %v917
      %v919 = vpop.f32.mrf.mxu0
      %v920 = vadd.f32 0.0, %v919
      %v921 = vpop.f32.mrf.mxu0
      %v922 = vadd.f32 0.0, %v921
      %923 = vdwg.mxu0
      %v924 = vmax.f32 %v846, %v848
      %925 = vmax.xlane.f32.xlu0 %v924
      %v926 = vpop.xlane.xlu0 %925
      %v927 = vmax.f32 %v850, %v852
      %928 = vmax.xlane.f32.xlu0 %v927
      %v929 = vpop.xlane.xlu0 %928
      %v930 = vmax.f32 %v856, %v858
      %931 = vmax.xlane.f32.xlu0 %v930
      %v932 = vpop.xlane.xlu0 %931
      %v933 = vmax.f32 %v860, %v862
      %934 = vmax.xlane.f32.xlu0 %v933
      %v935 = vpop.xlane.xlu0 %934
      %v936 = vmax.f32 %v866, %v868
      %937 = vmax.xlane.f32.xlu0 %v936
      %v938 = vpop.xlane.xlu0 %937
      %v939 = vmax.f32 %v870, %v872
      %940 = vmax.xlane.f32.xlu0 %v939
      %v941 = vpop.xlane.xlu0 %940
      %v942 = vmax.f32 %v876, %v878
      %943 = vmax.xlane.f32.xlu0 %v942
      %v944 = vpop.xlane.xlu0 %943
      %v945 = vmax.f32 %v880, %v882
      %946 = vmax.xlane.f32.xlu0 %v945
      %v947 = vpop.xlane.xlu0 %946
      %v948 = vmax.f32 %v886, %v888
      %949 = vmax.xlane.f32.xlu0 %v948
      %v950 = vpop.xlane.xlu0 %949
      %v951 = vmax.f32 %v890, %v892
      %952 = vmax.xlane.f32.xlu0 %v951
      %v953 = vpop.xlane.xlu0 %952
      %v954 = vmax.f32 %v896, %v898
      %955 = vmax.xlane.f32.xlu0 %v954
      %v956 = vpop.xlane.xlu0 %955
      %v957 = vmax.f32 %v900, %v902
      %958 = vmax.xlane.f32.xlu0 %v957
      %v959 = vpop.xlane.xlu0 %958
      %v960 = vmax.f32 %v906, %v908
      %961 = vmax.xlane.f32.xlu0 %v960
      %v962 = vpop.xlane.xlu0 %961
      %v963 = vmax.f32 %v910, %v912
      %964 = vmax.xlane.f32.xlu0 %v963
      %v965 = vpop.xlane.xlu0 %964
      %v966 = vmax.f32 %v916, %v918
      %967 = vmax.xlane.f32.xlu0 %v966
      %v968 = vpop.xlane.xlu0 %967
      %v969 = vmax.f32 %v920, %v922
      %970 = vmax.xlane.f32.xlu0 %v969
      %v971 = vpop.xlane.xlu0 %970
      %v972 = vsub.f32 %v846, %v926
      %v973 = vsub.f32 %v848, %v926
      %v974 = vsub.f32 %v850, %v929
      %v975 = vsub.f32 %v852, %v929
      %v976 = vsub.f32 %v856, %v932
      %v977 = vsub.f32 %v858, %v932
      %v978 = vsub.f32 %v860, %v935
      %v979 = vsub.f32 %v862, %v935
      %v980 = vsub.f32 %v866, %v938
      %v981 = vsub.f32 %v868, %v938
      %v982 = vsub.f32 %v870, %v941
      %v983 = vsub.f32 %v872, %v941
      %v984 = vsub.f32 %v876, %v944
      %v985 = vsub.f32 %v878, %v944
      %v986 = vsub.f32 %v880, %v947
      %v987 = vsub.f32 %v882, %v947
      %v988 = vsub.f32 %v886, %v950
      %v989 = vsub.f32 %v888, %v950
      %v990 = vsub.f32 %v890, %v953
      %v991 = vsub.f32 %v892, %v953
      %v992 = vsub.f32 %v896, %v956
      %v993 = vsub.f32 %v898, %v956
      %v994 = vsub.f32 %v900, %v959
      %v995 = vsub.f32 %v902, %v959
      %v996 = vsub.f32 %v906, %v962
      %v997 = vsub.f32 %v908, %v962
      %v998 = vsub.f32 %v910, %v965
      %v999 = vsub.f32 %v912, %v965
      %v1000 = vsub.f32 %v916, %v968
      %v1001 = vsub.f32 %v918, %v968
      %v1002 = vsub.f32 %v920, %v971
      %v1003 = vsub.f32 %v922, %v971
      %v1004 = vmul.f32 %v972, 1.442695
      %v1005 = vpow.pop %v1004
      %v1006 = vmul.f32 %v973, 1.442695
      %v1007 = vpow.pop %v1006
      %v1008 = vmul.f32 %v974, 1.442695
      %v1009 = vpow.pop %v1008
      %v1010 = vmul.f32 %v975, 1.442695
      %v1011 = vpow.pop %v1010
      %v1012 = vmul.f32 %v976, 1.442695
      %v1013 = vpow.pop %v1012
      %v1014 = vmul.f32 %v977, 1.442695
      %v1015 = vpow.pop %v1014
      %v1016 = vmul.f32 %v978, 1.442695
      %v1017 = vpow.pop %v1016
      %v1018 = vmul.f32 %v979, 1.442695
      %v1019 = vpow.pop %v1018
      %v1020 = vmul.f32 %v980, 1.442695
      %v1021 = vpow.pop %v1020
      %v1022 = vmul.f32 %v981, 1.442695
      %v1023 = vpow.pop %v1022
      %v1024 = vmul.f32 %v982, 1.442695
      %v1025 = vpow.pop %v1024
      %v1026 = vmul.f32 %v983, 1.442695
      %v1027 = vpow.pop %v1026
      %v1028 = vmul.f32 %v984, 1.442695
      %v1029 = vpow.pop %v1028
      %v1030 = vmul.f32 %v985, 1.442695
      %v1031 = vpow.pop %v1030
      %v1032 = vmul.f32 %v986, 1.442695
      %v1033 = vpow.pop %v1032
      %v1034 = vmul.f32 %v987, 1.442695
      %v1035 = vpow.pop %v1034
      %v1036 = vmul.f32 %v988, 1.442695
      %v1037 = vpow.pop %v1036
      %v1038 = vmul.f32 %v989, 1.442695
      %v1039 = vpow.pop %v1038
      %v1040 = vmul.f32 %v990, 1.442695
      %v1041 = vpow.pop %v1040
      %v1042 = vmul.f32 %v991, 1.442695
      %v1043 = vpow.pop %v1042
      %v1044 = vmul.f32 %v992, 1.442695
      %v1045 = vpow.pop %v1044
      %v1046 = vmul.f32 %v993, 1.442695
      %v1047 = vpow.pop %v1046
      %v1048 = vmul.f32 %v994, 1.442695
      %v1049 = vpow.pop %v1048
      %v1050 = vmul.f32 %v995, 1.442695
      %v1051 = vpow.pop %v1050
      %v1052 = vmul.f32 %v996, 1.442695
      %v1053 = vpow.pop %v1052
      %v1054 = vmul.f32 %v997, 1.442695
      %v1055 = vpow.pop %v1054
      %v1056 = vmul.f32 %v998, 1.442695
      %v1057 = vpow.pop %v1056
      %v1058 = vmul.f32 %v999, 1.442695
      %v1059 = vpow.pop %v1058
      %v1060 = vmul.f32 %v1000, 1.442695
      %v1061 = vpow.pop %v1060
      %v1062 = vmul.f32 %v1001, 1.442695
      %v1063 = vpow.pop %v1062
      %v1064 = vmul.f32 %v1002, 1.442695
      %v1065 = vpow.pop %v1064
      %v1066 = vmul.f32 %v1003, 1.442695
      %v1067 = vpow.pop %v1066
      %v1068 = vadd.f32 %v1005, %v1007
      %1069 = vadd.xlane.f32.xlu0 %v1068
      %v1070 = vpop.xlane.xlu0 %1069
      %v1071 = vadd.f32 %v1009, %v1011
      %1072 = vadd.xlane.f32.xlu0 %v1071
      %v1073 = vpop.xlane.xlu0 %1072
      %v1074 = vadd.f32 %v1013, %v1015
      %1075 = vadd.xlane.f32.xlu0 %v1074
      %v1076 = vpop.xlane.xlu0 %1075
      %v1077 = vadd.f32 %v1017, %v1019
      %1078 = vadd.xlane.f32.xlu0 %v1077
      %v1079 = vpop.xlane.xlu0 %1078
      %v1080 = vadd.f32 %v1021, %v1023
      %1081 = vadd.xlane.f32.xlu0 %v1080
      %v1082 = vpop.xlane.xlu0 %1081
      %v1083 = vadd.f32 %v1025, %v1027
      %1084 = vadd.xlane.f32.xlu0 %v1083
      %v1085 = vpop.xlane.xlu0 %1084
      %v1086 = vadd.f32 %v1029, %v1031
      %1087 = vadd.xlane.f32.xlu0 %v1086
      %v1088 = vpop.xlane.xlu0 %1087
      %v1089 = vadd.f32 %v1033, %v1035
      %1090 = vadd.xlane.f32.xlu0 %v1089
      %v1091 = vpop.xlane.xlu0 %1090
      %v1092 = vadd.f32 %v1037, %v1039
      %1093 = vadd.xlane.f32.xlu0 %v1092
      %v1094 = vpop.xlane.xlu0 %1093
      %v1095 = vadd.f32 %v1041, %v1043
      %1096 = vadd.xlane.f32.xlu0 %v1095
      %v1097 = vpop.xlane.xlu0 %1096
      %v1098 = vadd.f32 %v1045, %v1047
      %1099 = vadd.xlane.f32.xlu0 %v1098
      %v1100 = vpop.xlane.xlu0 %1099
      %v1101 = vadd.f32 %v1049, %v1051
      %1102 = vadd.xlane.f32.xlu0 %v1101
      %v1103 = vpop.xlane.xlu0 %1102
      %v1104 = vadd.f32 %v1053, %v1055
      %1105 = vadd.xlane.f32.xlu0 %v1104
      %v1106 = vpop.xlane.xlu0 %1105
      %v1107 = vadd.f32 %v1057, %v1059
      %1108 = vadd.xlane.f32.xlu0 %v1107
      %v1109 = vpop.xlane.xlu0 %1108
      %v1110 = vadd.f32 %v1061, %v1063
      %1111 = vadd.xlane.f32.xlu0 %v1110
      %v1112 = vpop.xlane.xlu0 %1111
      %v1113 = vadd.f32 %v1065, %v1067
      %1114 = vadd.xlane.f32.xlu0 %v1113
      %v1115 = vpop.xlane.xlu0 %1114
      %v1116 = vrcp.pop %v1070
      %v1117 = vrcp.pop %v1073
      %v1118 = vrcp.pop %v1076
      %v1119 = vrcp.pop %v1079
      %v1120 = vrcp.pop %v1082
      %v1121 = vrcp.pop %v1085
      %v1122 = vrcp.pop %v1088
      %v1123 = vrcp.pop %v1091
      %v1124 = vrcp.pop %v1094
      %v1125 = vrcp.pop %v1097
      %v1126 = vrcp.pop %v1100
      %v1127 = vrcp.pop %v1103
      %v1128 = vrcp.pop %v1106
      %v1129 = vrcp.pop %v1109
      %v1130 = vrcp.pop %v1112
      %v1131 = vrcp.pop %v1115
      %v1132 = vmul.f32 %v1005, %v1116
      %v1133 = vmul.f32 %v1007, %v1116
      %v1134 = vmul.f32 %v1009, %v1117
      %v1135 = vmul.f32 %v1011, %v1117
      %v1136 = vmul.f32 %v1013, %v1118
      %v1137 = vmul.f32 %v1015, %v1118
      %v1138 = vmul.f32 %v1017, %v1119
      %v1139 = vmul.f32 %v1019, %v1119
      %v1140 = vmul.f32 %v1021, %v1120
      %v1141 = vmul.f32 %v1023, %v1120
      %v1142 = vmul.f32 %v1025, %v1121
      %v1143 = vmul.f32 %v1027, %v1121
      %v1144 = vmul.f32 %v1029, %v1122
      %v1145 = vmul.f32 %v1031, %v1122
      %v1146 = vmul.f32 %v1033, %v1123
      %v1147 = vmul.f32 %v1035, %v1123
      %v1148 = vmul.f32 %v1037, %v1124
      %v1149 = vmul.f32 %v1039, %v1124
      %v1150 = vmul.f32 %v1041, %v1125
      %v1151 = vmul.f32 %v1043, %v1125
      %v1152 = vmul.f32 %v1045, %v1126
      %v1153 = vmul.f32 %v1047, %v1126
      %v1154 = vmul.f32 %v1049, %v1127
      %v1155 = vmul.f32 %v1051, %v1127
      %v1156 = vmul.f32 %v1053, %v1128
      %v1157 = vmul.f32 %v1055, %v1128
      %v1158 = vmul.f32 %v1057, %v1129
      %v1159 = vmul.f32 %v1059, %v1129
      %v1160 = vmul.f32 %v1061, %v1130
      %v1161 = vmul.f32 %v1063, %v1130
      %v1162 = vmul.f32 %v1065, %v1131
      %v1163 = vmul.f32 %v1067, %v1131
      %v1164 = vpack.c.bf16 %v1134, %v1132
      %v1165 = vpack.c.bf16 %v1135, %v1133
      %v1166 = vpack.c.bf16 %v1138, %v1136
      %v1167 = vpack.c.bf16 %v1139, %v1137
      %v1168 = vpack.c.bf16 %v1142, %v1140
      %v1169 = vpack.c.bf16 %v1143, %v1141
      %v1170 = vpack.c.bf16 %v1146, %v1144
      %v1171 = vpack.c.bf16 %v1147, %v1145
      %v1172 = vpack.c.bf16 %v1150, %v1148
      %v1173 = vpack.c.bf16 %v1151, %v1149
      %v1174 = vpack.c.bf16 %v1154, %v1152
      %v1175 = vpack.c.bf16 %v1155, %v1153
      %v1176 = vpack.c.bf16 %v1158, %v1156
      %v1177 = vpack.c.bf16 %v1159, %v1157
      %v1178 = vpack.c.bf16 %v1162, %v1160
      %v1179 = vpack.c.bf16 %v1163, %v1161
      %v1180 = vld [vmem:[%s406] sm:$0xf]
      %v1183 = vrot.slane %v761, 1
      %v1184 = vrot.slane %v762, 1
      %1187 = vmatprep.subr.bf16.mxu0 %v1179
      %1188 = vmatpush1.bf16.xpose.msra.mxu0 %v1178
      %1189 = vmatprep.subr.bf16.mxu0 %v1177
      %1190 = vmatpush1.bf16.xpose.msra.mxu0 %v1176
      %1191 = vmatprep.subr.bf16.mxu0 %v1175
      %1192 = vmatpush1.bf16.xpose.msra.mxu0 %v1174
      %1193 = vmatprep.subr.bf16.mxu0 %v1173
      %1194 = vmatpush1.bf16.xpose.msra.mxu0 %v1172
      %1195 = vmatprep.subr.bf16.mxu0 %v1171
      %1196 = vmatpush1.bf16.xpose.msra.mxu0 %v1170
      %1197 = vmatprep.subr.bf16.mxu0 %v1169
      %1198 = vmatpush1.bf16.xpose.msra.mxu0 %v1168
      %1199 = vmatprep.subr.bf16.mxu0 %v1167
      %1200 = vmatpush1.bf16.xpose.msra.mxu0 %v1166
      %1201 = vmatprep.subr.bf16.mxu0 %v1165
      %1202 = vmatpush1.bf16.xpose.msra.mxu0 %v1164
      %1203 = vmatprep.subr.bf16.mxu0 0
      %1204 = vmatpush2.bf16.xpose.msra.mxu0 0
      %1205 = vmatprep.subr.bf16.mxu0 0
      %1206 = vmatpush2.bf16.xpose.msra.mxu0 0
      %1207 = vmatprep.subr.bf16.mxu0 0
      %1208 = vmatpush2.bf16.xpose.msra.mxu0 0
      %1209 = vmatprep.subr.bf16.mxu0 0
      %1210 = vmatpush2.bf16.xpose.msra.mxu0 0
      %1211 = vmatprep.subr.bf16.mxu0 0
      %1212 = vmatpush2.bf16.xpose.msra.mxu0 0
      %1213 = vmatprep.subr.bf16.mxu0 0
      %1214 = vmatpush2.bf16.xpose.msra.mxu0 0
      %1215 = vmatprep.subr.bf16.mxu0 0
      %1216 = vmatpush2.bf16.xpose.msra.mxu0 0
      %1217 = vmatprep.subr.bf16.mxu0 0
      %1218 = vmatpush2.bf16.xpose.msra.mxu0 0
      %1219 = vmatprep.mubr.bf16.mxu0 %v1184
      %1220 = vmatmul.mubr.bf16.gmra.mxu0 %v1183
      %v1221 = vpop.f32.mrf.mxu0
      %v1222 = vadd.f32 %v1180, %v1221
      %v1223 = vpop.f32.mrf.mxu0
      %v1224 = vpop.f32.mrf.mxu0
      %v1225 = vpop.f32.mrf.mxu0
      %1226 = vdwg.mxu0
      %1227 = vst [vmem:[%s414] sm:$0xf] %v1222
      %p1228 = scmp.lt.s32.totalorder %s24, 1
      %s1229 = scalar_select %p1228, %s24, 1
      %p1230 = scmp.lt.s32.totalorder %s25, 1
      %s1231 = scalar_select %p1230, %s25, 1
      %s1232 = smul.addr %s1229, 2
      %s1233 = sadd.s32 %s1231, %s1232
      %s1234 = smul.addr %s1233, 4
      %s1235 = scalar_lea.vmem %s9, %s1234
      // Predicated region
      $region57: #{spatial_att_pallas.1} parent=55 // pred_check
        %p1236 = pneg %p260
      $region58: #{spatial_att_pallas.1} parent=55 // pred_check_branch
        %1238 = sbr.rel (%p1236) target = $region60
      $region59: #{spatial_att_pallas.1} parent=55 // pred_region
        _
      $region60: #{spatial_att_pallas.1} parent=55 // pred_fallthru
        _
    $region56: #{spatial_att_pallas.1} parent=5 // pred_fallthru
      _
    %p1239 = scmp.le.s32.totalorder 2, %s15
    // Predicated region
    $region61: #{spatial_att_pallas.1} parent=5 // pred_check
      %p1240 = pneg %p1239
    $region62: #{spatial_att_pallas.1} parent=5 // pred_check_branch
      %1242 = sbr.rel (%p1240) target = $region64
    $region63: #{spatial_att_pallas.1} parent=5 // pred_region
      %s1243 = ssub.s32 %s15, 2
      // Predicated region
      $region65: #{spatial_att_pallas.1} parent=63 // pred_check
        %p1244 = pneg %p266
      $region66: #{spatial_att_pallas.1} parent=63 // pred_check_branch
        %1246 = sbr.rel (%p1244) target = $region68
      $region67: #{spatial_att_pallas.1} parent=63 // pred_region
        %p1247 = scmp.lt.s32.totalorder %s26, 1
        %s1248 = scalar_select %p1247, %s26, 1
        %p1249 = scmp.lt.s32.totalorder %s27, 1
        %s1250 = scalar_select %p1249, %s27, 1
        %s1251 = smul.addr %s1248, 2
        %s1252 = sadd.s32 %s1250, %s1251
        %s1253 = smul.addr %s1252, 4
        %s1254 = scalar_lea.vmem %s9, %s1253
      $region68: #{spatial_att_pallas.1} parent=63 // pred_fallthru
        _
    $region64: #{spatial_att_pallas.1} parent=5 // pred_fallthru
      _
  $region6: #{spatial_att_pallas.1} parent=0 // loop_footer
    %s19 = sadd.s32 1, %s15
  $region7: #{spatial_att_pallas.1} parent=0 // loop_footer_branch
    %14 = sbr.rel target = $region3
  $region8: #{spatial_att_pallas.1} parent=0 // loop_exit
    _

</llo_original>
